<compile_context>
chip_gen: v7x
topology: tpu7x:2x2x1
jax: 0.10.0
libtpu: 0.0.40
codegen_flags: <defaults>
</compile_context>

<pallas_src>
import jax
import jax.numpy as jnp
from jax.experimental import pallas as pl
from jax.experimental.pallas import tpu as pltpu

LANE = 128


def _round_up(x, m):
    return (x + m - 1) // m * m


def _mlp_kernel(p_ref, z_ref, w1p_ref, w1z_ref, b1_ref, w2_ref, b2_ref, o_ref):
    """One batch tile of  relu([params | z] @ W1 + b1) @ W2 + b2."""
    # First layer: the concat is fused as two MXU dots against the split W1.
    h = jnp.dot(p_ref[...], w1p_ref[...], preferred_element_type=jnp.float32)
    h = h + jnp.dot(z_ref[...], w1z_ref[...], preferred_element_type=jnp.float32)
    # Bias + ReLU in f32 on the VPU (safe on v5e/v6e/v7x).
    h = jnp.maximum(h + b1_ref[...], 0.0)
    # Second layer into a lane-dense (128-padded) output slab.
    o = jnp.dot(h.astype(w2_ref.dtype), w2_ref[...],
                preferred_element_type=jnp.float32)
    o_ref[...] = o + b2_ref[...]


def prepare_weights(w1, b1, w2, b2, *, n_params,
                    compute_dtype=jnp.bfloat16, lane=LANE):
    """One-time weight preparation (do at init, not per forward call).

    w1: (n_params + n_atoms, hidden)  stored as (in, out);  w2: (hidden, 3*n_atoms).
    Splits W1 for the fused concat, casts dot operands to `compute_dtype`, and
    zero-pads W2/b2 columns to a lane-dense multiple of 128.
    """
    hidden = w1.shape[1]
    d_out = w2.shape[1]
    d_out_pad = _round_up(d_out, lane)
    w1p = w1[:n_params].astype(compute_dtype)            # rows multiplying params
    w1z = w1[n_params:].astype(compute_dtype)            # rows multiplying z
    b1r = b1.reshape(1, hidden).astype(jnp.float32)
    w2p = jnp.zeros((hidden, d_out_pad), compute_dtype)
    w2p = w2p.at[:, :d_out].set(w2.astype(compute_dtype))
    b2p = jnp.zeros((1, d_out_pad), jnp.float32)
    b2p = b2p.at[0, :d_out].set(b2.astype(jnp.float32))
    return (w1p, w1z, b1r, w2p, b2p, d_out)


def meta_sampler_forward(params, z, prepared, *, n_atoms, tm=128):
    """params: (n_params,) or (B, n_params); z: (n_atoms,), (1, n_atoms) or (B, n_atoms).
    Returns (B, n_atoms, 3); B=1 for the single-sample case, matching the PyTorch
    module's `reshape(-1, n_atoms, 3)`."""
    w1p, w1z, b1r, w2p, b2p, d_out = prepared
    cdt = w1p.dtype

    if params.ndim == 1:
        params = params[None, :]
    if z.ndim == 1:
        z = z[None, :]
    B = params.shape[0]
    if z.shape[0] == 1 and B > 1:
        z = jnp.broadcast_to(z, (B, z.shape[1]))

    n_params = params.shape[1]
    n_z = z.shape[1]
    hidden = w1p.shape[1]
    d_out_pad = w2p.shape[1]

    # Batch (M) tiling: sublane multiple depends on the packed compute dtype.
    sub = 8 if cdt == jnp.float32 else 16
    tm_eff = tm if B >= tm else _round_up(B, sub)
    b_pad = _round_up(B, tm_eff)
    if b_pad != B:
        params = jnp.pad(params, ((0, b_pad - B), (0, 0)))
        z = jnp.pad(z, ((0, b_pad - B), (0, 0)))
    params = params.astype(cdt)
    z = z.astype(cdt)

    num_tiles = b_pad // tm_eff
    out_shape = jax.ShapeDtypeStruct((b_pad, d_out_pad), jnp.float32)
    operands = (params, z, w1p, w1z, b1r, w2p, b2p)

    if num_tiles == 1:
        # Whole (padded) batch fits one tile: no grid, no pipelining
        # bookkeeping — a single straight-line body on full-array VMEM blocks.
        out = pl.pallas_call(_mlp_kernel, out_shape=out_shape)(*operands)
    else:
        # Batch axis on the grid ("parallel" -> the two v7x TensorCores each
        # take half the rows).  Weights/biases map to block (0, 0) so they
        # stay VMEM-resident across every grid step; only the activation
        # stream (params/z in, output out) is double-buffered.
        out = pl.pallas_call(
            _mlp_kernel,
            out_shape=out_shape,
            grid=(num_tiles,),
            in_specs=[
                pl.BlockSpec((tm_eff, n_params), lambda i: (i, 0)),
                pl.BlockSpec((tm_eff, n_z), lambda i: (i, 0)),
                pl.BlockSpec((n_params, hidden), lambda i: (0, 0)),
                pl.BlockSpec((n_z, hidden), lambda i: (0, 0)),
                pl.BlockSpec((1, hidden), lambda i: (0, 0)),
                pl.BlockSpec((hidden, d_out_pad), lambda i: (0, 0)),
                pl.BlockSpec((1, d_out_pad), lambda i: (0, 0)),
            ],
            out_specs=pl.BlockSpec((tm_eff, d_out_pad), lambda i: (i, 0)),
            compiler_params=pltpu.CompilerParams(
                dimension_semantics=("parallel",)),
        )(*operands)

    out = out[:B, :d_out]                     # drop batch padding + lane padding
    return out.reshape(B, n_atoms, 3)


def init_params(key, n_params, n_atoms, hidden=128):
    """Deterministic synthetic weights matching torch.nn.Linear shapes
    (stored transposed: (in, out))."""
    d_in = n_params + n_atoms
    d_out = 3 * n_atoms
    k1, k2, k3, k4 = jax.random.split(key, 4)
    s1 = 1.0 / jnp.sqrt(d_in)
    s2 = 1.0 / jnp.sqrt(hidden)
    w1 = jax.random.uniform(k1, (d_in, hidden), jnp.float32, -s1, s1)
    b1 = jax.random.uniform(k2, (hidden,), jnp.float32, -s1, s1)
    w2 = jax.random.uniform(k3, (hidden, d_out), jnp.float32, -s2, s2)
    b2 = jax.random.uniform(k4, (d_out,), jnp.float32, -s2, s2)
    return w1, b1, w2, b2


def _bf16_reference(params_b, z_b, w1, b1, w2, b2, n_atoms):
    """Plain-JAX reference with the same bf16 operand / f32 accumulate recipe."""
    x = jnp.concatenate([params_b, z_b], axis=-1).astype(jnp.bfloat16)
    h = jnp.dot(x, w1.astype(jnp.bfloat16),
                preferred_element_type=jnp.float32) + b1
    h = jnp.maximum(h, 0.0).astype(jnp.bfloat16)
    o = jnp.dot(h, w2.astype(jnp.bfloat16),
                preferred_element_type=jnp.float32) + b2
    return o.reshape(-1, n_atoms, 3)


if __name__ == "__main__":
    n_params, n_atoms, hidden = 32, 8, 128

    key = jax.random.PRNGKey(0)
    k_w, k_p, k_z, k_bp, k_bz = jax.random.split(key, 5)
    w1, b1, w2, b2 = init_params(k_w, n_params, n_atoms, hidden)

    # ---- single-sample call (matches the PyTorch module), f32 compute ------
    params = jax.random.normal(k_p, (n_params,), jnp.float32)
    z = jax.random.randint(k_z, (1, n_atoms), 1, 10).astype(jnp.float32)

    prep_f32 = prepare_weights(w1, b1, w2, b2, n_params=n_params,
                               compute_dtype=jnp.float32)
    out1 = jax.block_until_ready(
        meta_sampler_forward(params, z, prep_f32, n_atoms=n_atoms))

    hp = jax.lax.Precision.HIGHEST
    x_ref = jnp.concatenate([params.reshape(1, -1), z], axis=-1)
    h_ref = jnp.maximum(jnp.dot(x_ref, w1, precision=hp) + b1, 0.0)
    ref1 = (jnp.dot(h_ref, w2, precision=hp) + b2).reshape(-1, n_atoms, 3)
    assert out1.shape == (1, n_atoms, 3), out1.shape
    assert jnp.allclose(out1, ref1, atol=5e-2, rtol=5e-2), "f32 path mismatch"

    # ---- batched bf16 compute, single-tile (no grid) path -------------------
    B_small = 4
    params_s = jax.random.normal(k_bp, (B_small, n_params), jnp.float32)
    z_s = jax.random.randint(k_bz, (B_small, n_atoms), 1, 10).astype(jnp.float32)
    prep_bf16 = prepare_weights(w1, b1, w2, b2, n_params=n_params,
                                compute_dtype=jnp.bfloat16)
    out_s = jax.block_until_ready(
        meta_sampler_forward(params_s, z_s, prep_bf16, n_atoms=n_atoms))
    ref_s = _bf16_reference(params_s, z_s, w1, b1, w2, b2, n_atoms)
    assert out_s.shape == (B_small, n_atoms, 3), out_s.shape
    assert jnp.allclose(out_s, ref_s, atol=1e-2, rtol=1e-2), "bf16 small-batch mismatch"

    # ---- batched bf16 compute, gridded (tm=128, weights VMEM-resident) ------
    B_big = 256
    kp2, kz2 = jax.random.split(jax.random.PRNGKey(1), 2)
    params_l = jax.random.normal(kp2, (B_big, n_params), jnp.float32)
    z_l = jax.random.randint(kz2, (B_big, n_atoms), 1, 10).astype(jnp.float32)
    out_l = jax.block_until_ready(
        meta_sampler_forward(params_l, z_l, prep_bf16, n_atoms=n_atoms))
    ref_l = _bf16_reference(params_l, z_l, w1, b1, w2, b2, n_atoms)
    assert out_l.shape == (B_big, n_atoms, 3), out_l.shape
    assert jnp.allclose(out_l, ref_l, atol=1e-2, rtol=1e-2), "bf16 batched mismatch"

    print("KERNEL_OK")
</pallas_src>

<mosaic_0001>
module attributes {stable_mosaic.version = 11 : i64} {
  func.func @_mlp_kernel(%arg0: memref<8x32xf32, #tpu.memory_space<vmem>>, %arg1: memref<8x8xf32, #tpu.memory_space<vmem>>, %arg2: memref<32x128xf32, #tpu.memory_space<vmem>>, %arg3: memref<8x128xf32, #tpu.memory_space<vmem>>, %arg4: memref<1x128xf32, #tpu.memory_space<vmem>>, %arg5: memref<128x128xf32, #tpu.memory_space<vmem>>, %arg6: memref<1x128xf32, #tpu.memory_space<vmem>>, %arg7: memref<8x128xf32, #tpu.memory_space<vmem>>) attributes {dimension_semantics = [], scalar_prefetch = 0 : i64, scratch_operands = 0 : i64, tpu.core_type = #tpu.core_type<tc>} {
    %c0 = arith.constant 0 : index
    %c0_0 = arith.constant 0 : index
    %0 = vector.load %arg0[%c0, %c0_0] : memref<8x32xf32, #tpu.memory_space<vmem>>, vector<8x32xf32>
    %c0_1 = arith.constant 0 : index
    %c0_2 = arith.constant 0 : index
    %1 = vector.load %arg2[%c0_1, %c0_2] : memref<32x128xf32, #tpu.memory_space<vmem>>, vector<32x128xf32>
    %cst = arith.constant dense<0.000000e+00> : vector<8x128xf32>
    %2 = tpu.matmul %0, %1, %cst {dimension_numbers = #tpu.dot_dimension_numbers<[1], [0], [0], [1], [0, 0, 1, 1], [], []>} : vector<8x32xf32>, vector<32x128xf32>, vector<8x128xf32> -> vector<8x128xf32>
    %c0_3 = arith.constant 0 : index
    %c0_4 = arith.constant 0 : index
    %3 = vector.load %arg1[%c0_3, %c0_4] : memref<8x8xf32, #tpu.memory_space<vmem>>, vector<8x8xf32>
    %c0_5 = arith.constant 0 : index
    %c0_6 = arith.constant 0 : index
    %4 = vector.load %arg3[%c0_5, %c0_6] : memref<8x128xf32, #tpu.memory_space<vmem>>, vector<8x128xf32>
    %cst_7 = arith.constant dense<0.000000e+00> : vector<8x128xf32>
    %5 = tpu.matmul %3, %4, %cst_7 {dimension_numbers = #tpu.dot_dimension_numbers<[1], [0], [0], [1], [0, 0, 1, 1], [], []>} : vector<8x8xf32>, vector<8x128xf32>, vector<8x128xf32> -> vector<8x128xf32>
    %6 = arith.addf %2, %5 : vector<8x128xf32>
    %c0_8 = arith.constant 0 : index
    %c0_9 = arith.constant 0 : index
    %7 = vector.load %arg4[%c0_8, %c0_9] : memref<1x128xf32, #tpu.memory_space<vmem>>, vector<1x128xf32>
    %8 = vector.broadcast %7 : vector<1x128xf32> to vector<8x128xf32>
    %9 = arith.addf %6, %8 : vector<8x128xf32>
    %cst_10 = arith.constant 0.000000e+00 : f32
    %10 = vector.broadcast %cst_10 : f32 to vector<8x128xf32>
    %11 = arith.maximumf %9, %10 : vector<8x128xf32>
    %c0_11 = arith.constant 0 : index
    %c0_12 = arith.constant 0 : index
    %12 = vector.load %arg5[%c0_11, %c0_12] : memref<128x128xf32, #tpu.memory_space<vmem>>, vector<128x128xf32>
    %cst_13 = arith.constant dense<0.000000e+00> : vector<8x128xf32>
    %13 = tpu.matmul %11, %12, %cst_13 {dimension_numbers = #tpu.dot_dimension_numbers<[1], [0], [0], [1], [0, 0, 1, 1], [], []>} : vector<8x128xf32>, vector<128x128xf32>, vector<8x128xf32> -> vector<8x128xf32>
    %c0_14 = arith.constant 0 : index
    %c0_15 = arith.constant 0 : index
    %14 = vector.load %arg6[%c0_14, %c0_15] : memref<1x128xf32, #tpu.memory_space<vmem>>, vector<1x128xf32>
    %15 = vector.broadcast %14 : vector<1x128xf32> to vector<8x128xf32>
    %16 = arith.addf %13, %15 : vector<8x128xf32>
    %c0_16 = arith.constant 0 : index
    %c0_17 = arith.constant 0 : index
    %17 = vector.load %arg7[%c0_16, %c0_17] : memref<8x128xf32, #tpu.memory_space<vmem>>, vector<8x128xf32>
    tpu.vector_store %arg7[%c0_16, %c0_17], %16 {strides = array<i32>} : memref<8x128xf32, #tpu.memory_space<vmem>>, vector<8x128xf32>,
    return
  }
}

</mosaic_0001>

<llo_original>
// kernel: tpu_custom_call.1
$region0: #{tpu_custom_call.1}
  #allocation0 [shape = 'u32[]', space=smem, size = 0x4, offset = 0x4, fixed_abs, tag = 'smem constant byte address 0x4 - core index']
  #allocation1 [shape = 'u32[144,128]{1,0:T(1,128)}', space=vmem, size = 0x12000, scoped, tag = 'internal scratch']
  %s0 = inlined_call_operand.hbm [shape: f32[8,32], index: 0, kind: input, shape index: {}]
  %s1 = inlined_call_operand.hbm [shape: f32[8,8], index: 1, kind: input, shape index: {}]
  %s2 = inlined_call_operand.hbm [shape: f32[32,128], index: 2, kind: input, shape index: {}]
  %s3 = inlined_call_operand.vmem [shape: f32[8,128], index: 3, kind: input, shape index: {}]
  %s4 = inlined_call_operand.vmem [shape: f32[1,128], index: 4, kind: input, shape index: {}]
  %s5 = inlined_call_operand.hbm [shape: f32[128,128], index: 5, kind: input, shape index: {}]
  %s6 = inlined_call_operand.vmem [shape: f32[1,128], index: 6, kind: input, shape index: {}]
  %s7 = inlined_call_operand.hbm [shape: f32[8,128], index: 7, kind: output, shape index: {}]
  %s8 = sld [smem:[#allocation0]]
  $region54: #{tpu_custom_call.1} parent=0
    _
  %s10 = ssub.s32 1, %s8
  %s11 = scalar_select 0, %s10, %s8
  $region1: #{tpu_custom_call.1} parent=0
    #allocation2 [shape = 'u8[4096]{0}', space=vmem, size = 0x1000, scoped, tag = 'input window, operand 0, single buffered']
    #allocation3 [shape = 's32[1]{0}', space=sflag, size = 0x4, scoped, tag = 'scoped memory for tpu_custom_call.1']
    #allocation4 [shape = 's32[1]{0}', space=sflag, size = 0x4, scoped, tag = 'scoped memory for tpu_custom_call.1']
    #allocation5 [shape = 'u8[4096]{0}', space=vmem, size = 0x1000, scoped, tag = 'input window, operand 1, single buffered']
    #allocation6 [shape = 's32[1]{0}', space=sflag, size = 0x4, scoped, tag = 'scoped memory for tpu_custom_call.1']
    #allocation7 [shape = 'u8[16384]{0}', space=vmem, size = 0x4000, scoped, tag = 'input window, operand 2, single buffered']
    #allocation8 [shape = 'u8[65536]{0}', space=vmem, size = 0x10000, scoped, tag = 'input window, operand 5, single buffered']
    #allocation9 [shape = 's32[1]{0}', space=sflag, size = 0x4, scoped, tag = 'scoped memory for tpu_custom_call.1']
    #allocation10 [shape = 'u8[4096]{0}', space=vmem, size = 0x1000, scoped, tag = 'output window, operand 0, single buffered']
    %12 = vsyncpa [#allocation3], 0
    %13 = vsyncpa [#allocation6], 0
    %14 = vsyncpa [#allocation9], 0
    %15 = vsyncpa [#allocation4], 0
    // Predicated region
    $region2: #{tpu_custom_call.1} parent=1 // pred_check
      _
    $region3: #{tpu_custom_call.1} parent=1 // pred_check_branch
      %17 = sbr.rel (0) target = $region5
    $region4: #{tpu_custom_call.1} parent=1 // pred_region
      %s19 = ssub.s32 128, 128
      %20 = vsyncadd [#allocation3], %s19
      %s22 = sshll.u32 [#allocation2], 4
      %s23 = int_to_ptr.vmem [resolvable:$true] %s22
      %25 = dma.hbm_to_vmem [thread:$0]  %s0, 128, %s23, [#allocation3]
    $region5: #{tpu_custom_call.1} parent=1 // pred_fallthru
      _
    // Predicated region
    $region6: #{tpu_custom_call.1} parent=1 // pred_check
      _
    $region7: #{tpu_custom_call.1} parent=1 // pred_check_branch
      %27 = sbr.rel (0) target = $region9
    $region8: #{tpu_custom_call.1} parent=1 // pred_region
      %s29 = ssub.s32 128, 128
      %30 = vsyncadd [#allocation6], %s29
      %s32 = sshll.u32 [#allocation5], 4
      %s33 = int_to_ptr.vmem [resolvable:$true] %s32
      %35 = dma.hbm_to_vmem [thread:$0]  %s1, 128, %s33, [#allocation6]
    $region9: #{tpu_custom_call.1} parent=1 // pred_fallthru
      _
    // Predicated region
    $region10: #{tpu_custom_call.1} parent=1 // pred_check
      _
    $region11: #{tpu_custom_call.1} parent=1 // pred_check_branch
      %37 = sbr.rel (0) target = $region13
    $region12: #{tpu_custom_call.1} parent=1 // pred_region
      %s39 = ssub.s32 512, 512
      %40 = vsyncadd [#allocation6], %s39
      %s41 = sshll.u32 [#allocation7], 4
      %s42 = int_to_ptr.vmem [resolvable:$true] %s41
      %47 = dma.hbm_to_vmem [thread:$0]  %s2, 512, %s42, [#allocation6], 128, 128, 8
    $region13: #{tpu_custom_call.1} parent=1 // pred_fallthru
      _
    // Predicated region
    $region14: #{tpu_custom_call.1} parent=1 // pred_check
      _
    $region15: #{tpu_custom_call.1} parent=1 // pred_check_branch
      %49 = sbr.rel (0) target = $region17
    $region16: #{tpu_custom_call.1} parent=1 // pred_region
      _
    $region17: #{tpu_custom_call.1} parent=1 // pred_fallthru
      _
    // Predicated region
    $region18: #{tpu_custom_call.1} parent=1 // pred_check
      _
    $region19: #{tpu_custom_call.1} parent=1 // pred_check_branch
      %51 = sbr.rel (0) target = $region21
    $region20: #{tpu_custom_call.1} parent=1 // pred_region
      _
    $region21: #{tpu_custom_call.1} parent=1 // pred_fallthru
      _
    // Predicated region
    $region22: #{tpu_custom_call.1} parent=1 // pred_check
      _
    $region23: #{tpu_custom_call.1} parent=1 // pred_check_branch
      %53 = sbr.rel (0) target = $region25
    $region24: #{tpu_custom_call.1} parent=1 // pred_region
      %s55 = ssub.s32 2048, 2048
      %56 = vsyncadd [#allocation9], %s55
      %s57 = sshll.u32 [#allocation8], 4
      %s58 = int_to_ptr.vmem [resolvable:$true] %s57
      %63 = dma.hbm_to_vmem [thread:$0]  %s5, 2048, %s58, [#allocation9], 128, 128, 8
    $region25: #{tpu_custom_call.1} parent=1 // pred_fallthru
      _
    // Predicated region
    $region26: #{tpu_custom_call.1} parent=1 // pred_check
      _
    $region27: #{tpu_custom_call.1} parent=1 // pred_check_branch
      %65 = sbr.rel (0) target = $region29
    $region28: #{tpu_custom_call.1} parent=1 // pred_region
      _
    $region29: #{tpu_custom_call.1} parent=1 // pred_fallthru
      _
    // Predicated region
    $region30: #{tpu_custom_call.1} parent=1 // pred_check
      _
    $region31: #{tpu_custom_call.1} parent=1 // pred_check_branch
      %67 = sbr.rel (0) target = $region33
    $region32: #{tpu_custom_call.1} parent=1 // pred_region
      %68 = dma.done [#allocation3], 128
    $region33: #{tpu_custom_call.1} parent=1 // pred_fallthru
      _
    // Predicated region
    $region34: #{tpu_custom_call.1} parent=1 // pred_check
      _
    $region35: #{tpu_custom_call.1} parent=1 // pred_check_branch
      %70 = sbr.rel (0) target = $region37
    $region36: #{tpu_custom_call.1} parent=1 // pred_region
      %71 = dma.done [#allocation6], 128
    $region37: #{tpu_custom_call.1} parent=1 // pred_fallthru
      _
    // Predicated region
    $region38: #{tpu_custom_call.1} parent=1 // pred_check
      _
    $region39: #{tpu_custom_call.1} parent=1 // pred_check_branch
      %73 = sbr.rel (0) target = $region41
    $region40: #{tpu_custom_call.1} parent=1 // pred_region
      %74 = dma.done [#allocation6], 512
    $region41: #{tpu_custom_call.1} parent=1 // pred_fallthru
      _
    // Predicated region
    $region42: #{tpu_custom_call.1} parent=1 // pred_check
      _
    $region43: #{tpu_custom_call.1} parent=1 // pred_check_branch
      %76 = sbr.rel (0) target = $region45
    $region44: #{tpu_custom_call.1} parent=1 // pred_region
      %77 = dma.done [#allocation9], 2048
    $region45: #{tpu_custom_call.1} parent=1 // pred_fallthru
      _
    %v78 = vld [vmem:[#allocation2] sm:$0xff]
    %v79 = vld [vmem:[#allocation7] sm:$0xff]
    %v80 = vld [vmem:[#allocation7 + $0x8] sm:$0xff]
    %v81 = vld [vmem:[#allocation7 + $0x10] sm:$0xff]
    %v82 = vld [vmem:[#allocation7 + $0x18] sm:$0xff]
    %v83 = vld [vmem:[#allocation5] sm:$0xff]
    %v84 = vld [vmem:[%s3] sm:$0xff]
    %vm85 = vcmask 64512
    %v87 = vsel %vm85, %v83, 0
    %89 = vmatprep.subr.mxu0 0.0
    %90 = vmatpush1.msra.mxu0 %v84
    %91 = vmatprep.subr.mxu0 0.0
    %92 = vmatpush1.msra.mxu0 0.0
    %93 = vmatprep.subr.mxu0 0.0
    %94 = vmatpush1.msra.mxu0 0.0
    %95 = vmatprep.subr.mxu0 0.0
    %96 = vmatpush1.msra.mxu0 0.0
    %97 = vmatprep.subr.mxu0 0.0
    %98 = vmatpush1.msra.mxu0 0.0
    %99 = vmatprep.subr.mxu0 0.0
    %100 = vmatpush1.msra.mxu0 0.0
    %101 = vmatprep.subr.mxu0 0.0
    %102 = vmatpush1.msra.mxu0 0.0
    %103 = vmatprep.subr.mxu0 0.0
    %104 = vmatpush1.msra.mxu0 0.0
    %105 = vmatprep.subr.mxu0 0.0
    %106 = vmatpush1.msra.mxu0 0.0
    %107 = vmatprep.subr.mxu0 0.0
    %108 = vmatpush1.msra.mxu0 0.0
    %109 = vmatprep.subr.mxu0 0.0
    %110 = vmatpush1.msra.mxu0 0.0
    %111 = vmatprep.subr.mxu0 0.0
    %112 = vmatpush1.msra.mxu0 0.0
    %113 = vmatprep.subr.mxu0 0.0
    %114 = vmatpush1.msra.mxu0 0.0
    %115 = vmatprep.subr.mxu0 0.0
    %116 = vmatpush1.msra.mxu0 0.0
    %117 = vmatprep.subr.mxu0 0.0
    %118 = vmatpush1.msra.mxu0 0.0
    %119 = vmatprep.subr.mxu0 0.0
    %120 = vmatpush1.msra.mxu0 0.0
    %121 = vmatprep.subr.mxu0 0.0
    %122 = vmatpush1.msra.mxu0 0.0
    %123 = vmatprep.subr.mxu0 0.0
    %124 = vmatpush1.msra.mxu0 0.0
    %125 = vmatprep.subr.mxu0 0.0
    %126 = vmatpush1.msra.mxu0 0.0
    %127 = vmatprep.subr.mxu0 0.0
    %128 = vmatpush1.msra.mxu0 0.0
    %129 = vmatprep.subr.mxu0 0.0
    %130 = vmatpush1.msra.mxu0 0.0
    %131 = vmatprep.subr.mxu0 0.0
    %132 = vmatpush1.msra.mxu0 0.0
    %133 = vmatprep.subr.mxu0 0.0
    %134 = vmatpush1.msra.mxu0 0.0
    %135 = vmatprep.subr.mxu0 0.0
    %136 = vmatpush1.msra.mxu0 0.0
    %137 = vmatprep.subr.mxu0 0.0
    %138 = vmatpush1.msra.mxu0 0.0
    %139 = vmatprep.subr.mxu0 0.0
    %140 = vmatpush1.msra.mxu0 0.0
    %141 = vmatprep.subr.mxu0 0.0
    %142 = vmatpush1.msra.mxu0 0.0
    %143 = vmatprep.subr.mxu0 0.0
    %144 = vmatpush1.msra.mxu0 0.0
    %145 = vmatprep.subr.mxu0 0.0
    %146 = vmatpush1.msra.mxu0 0.0
    %147 = vmatprep.subr.mxu0 0.0
    %148 = vmatpush1.msra.mxu0 0.0
    %149 = vmatprep.subr.mxu0 0.0
    %150 = vmatpush1.msra.mxu0 0.0
    %151 = vmatprep.subr.mxu0 0.0
    %152 = vmatpush1.msra.mxu0 0.0
    %153 = vmatprep.mubr.f32.mxu0 0.0
    %154 = vmatmul.mubr.f32.gmra.mrb[0].mxu0 %v87
    %v155 = vpop.f32.mrb[0].mxu0
    %v156 = vadd.f32 0.0, %v155
    %v157 = vpop.f32.mrb[0].mxu0
    %158 = vdwg.mxu0
    %vm159 = vcmask 261120
    %v161 = vsel %vm159, %v78, 0
    %163 = vmatprep.subr.mxu0 0.0
    %164 = vmatpush1.msra.mxu0 %v79
    %165 = vmatprep.subr.mxu0 0.0
    %166 = vmatpush1.msra.mxu0 %v80
    %167 = vmatprep.subr.mxu0 0.0
    %168 = vmatpush1.msra.mxu0 %v81
    %169 = vmatprep.subr.mxu0 0.0
    %170 = vmatpush1.msra.mxu0 %v82
    %171 = vmatprep.subr.mxu0 0.0
    %172 = vmatpush1.msra.mxu0 0.0
    %173 = vmatprep.subr.mxu0 0.0
    %174 = vmatpush1.msra.mxu0 0.0
    %175 = vmatprep.subr.mxu0 0.0
    %176 = vmatpush1.msra.mxu0 0.0
    %177 = vmatprep.subr.mxu0 0.0
    %178 = vmatpush1.msra.mxu0 0.0
    %179 = vmatprep.subr.mxu0 0.0
    %180 = vmatpush1.msra.mxu0 0.0
    %181 = vmatprep.subr.mxu0 0.0
    %182 = vmatpush1.msra.mxu0 0.0
    %183 = vmatprep.subr.mxu0 0.0
    %184 = vmatpush1.msra.mxu0 0.0
    %185 = vmatprep.subr.mxu0 0.0
    %186 = vmatpush1.msra.mxu0 0.0
    %187 = vmatprep.subr.mxu0 0.0
    %188 = vmatpush1.msra.mxu0 0.0
    %189 = vmatprep.subr.mxu0 0.0
    %190 = vmatpush1.msra.mxu0 0.0
    %191 = vmatprep.subr.mxu0 0.0
    %192 = vmatpush1.msra.mxu0 0.0
    %193 = vmatprep.subr.mxu0 0.0
    %194 = vmatpush1.msra.mxu0 0.0
    %195 = vmatprep.subr.mxu0 0.0
    %196 = vmatpush1.msra.mxu0 0.0
    %197 = vmatprep.subr.mxu0 0.0
    %198 = vmatpush1.msra.mxu0 0.0
    %199 = vmatprep.subr.mxu0 0.0
    %200 = vmatpush1.msra.mxu0 0.0
    %201 = vmatprep.subr.mxu0 0.0
    %202 = vmatpush1.msra.mxu0 0.0
    %203 = vmatprep.subr.mxu0 0.0
    %204 = vmatpush1.msra.mxu0 0.0
    %205 = vmatprep.subr.mxu0 0.0
    %206 = vmatpush1.msra.mxu0 0.0
    %207 = vmatprep.subr.mxu0 0.0
    %208 = vmatpush1.msra.mxu0 0.0
    %209 = vmatprep.subr.mxu0 0.0
    %210 = vmatpush1.msra.mxu0 0.0
    %211 = vmatprep.subr.mxu0 0.0
    %212 = vmatpush1.msra.mxu0 0.0
    %213 = vmatprep.subr.mxu0 0.0
    %214 = vmatpush1.msra.mxu0 0.0
    %215 = vmatprep.subr.mxu0 0.0
    %216 = vmatpush1.msra.mxu0 0.0
    %217 = vmatprep.subr.mxu0 0.0
    %218 = vmatpush1.msra.mxu0 0.0
    %219 = vmatprep.subr.mxu0 0.0
    %220 = vmatpush1.msra.mxu0 0.0
    %221 = vmatprep.subr.mxu0 0.0
    %222 = vmatpush1.msra.mxu0 0.0
    %223 = vmatprep.subr.mxu0 0.0
    %224 = vmatpush1.msra.mxu0 0.0
    %225 = vmatprep.subr.mxu0 0.0
    %226 = vmatpush1.msra.mxu0 0.0
    %227 = vmatprep.mubr.f32.mxu0 0.0
    %228 = vmatmul.mubr.f32.gmra.mrb[0].mxu0 %v161
    %v229 = vpop.f32.mrb[0].mxu0
    %v230 = vadd.f32 %v156, %v229
    %v231 = vpop.f32.mrb[0].mxu0
    %232 = vdwg.mxu0
    %v233 = vld [vmem:[%s4] sm:$0x1]
    %v235 = vlaneseq
    %v236 = vshrl.u32 %v235, 7
    %v237 = vsub.s32 0, %v236
    %v238 = vrot.slane %v233, %v237
    %v240 = vadd.f32 %v230, %v238
    %v241 = vmax.f32 %v240, 0.0
    %v242 = vld [vmem:[#allocation8] sm:$0xff]
    %v243 = vld [vmem:[#allocation8 + $0x8] sm:$0xff]
    %v244 = vld [vmem:[#allocation8 + $0x10] sm:$0xff]
    %v245 = vld [vmem:[#allocation8 + $0x18] sm:$0xff]
    %v246 = vld [vmem:[#allocation8 + $0x20] sm:$0xff]
    %v247 = vld [vmem:[#allocation8 + $0x28] sm:$0xff]
    %v248 = vld [vmem:[#allocation8 + $0x30] sm:$0xff]
    %v249 = vld [vmem:[#allocation8 + $0x38] sm:$0xff]
    %v250 = vld [vmem:[#allocation8 + $0x40] sm:$0xff]
    %v251 = vld [vmem:[#allocation8 + $0x48] sm:$0xff]
    %v252 = vld [vmem:[#allocation8 + $0x50] sm:$0xff]
    %v253 = vld [vmem:[#allocation8 + $0x58] sm:$0xff]
    %v254 = vld [vmem:[#allocation8 + $0x60] sm:$0xff]
    %v255 = vld [vmem:[#allocation8 + $0x68] sm:$0xff]
    %v256 = vld [vmem:[#allocation8 + $0x70] sm:$0xff]
    %v257 = vld [vmem:[#allocation8 + $0x78] sm:$0xff]
    %v258 = vld [vmem:[%s6] sm:$0x1]
    %v260 = vlaneseq
    %v261 = vshrl.u32 %v260, 7
    %v262 = vsub.s32 0, %v261
    %v263 = vrot.slane %v258, %v262
    %265 = vmatprep.subr.mxu0 0.0
    %266 = vmatpush1.msra.mxu0 %v242
    %267 = vmatprep.subr.mxu0 0.0
    %268 = vmatpush1.msra.mxu0 %v243
    %269 = vmatprep.subr.mxu0 0.0
    %270 = vmatpush1.msra.mxu0 %v244
    %271 = vmatprep.subr.mxu0 0.0
    %272 = vmatpush1.msra.mxu0 %v245
    %273 = vmatprep.subr.mxu0 0.0
    %274 = vmatpush1.msra.mxu0 %v246
    %275 = vmatprep.subr.mxu0 0.0
    %276 = vmatpush1.msra.mxu0 %v247
    %277 = vmatprep.subr.mxu0 0.0
    %278 = vmatpush1.msra.mxu0 %v248
    %279 = vmatprep.subr.mxu0 0.0
    %280 = vmatpush1.msra.mxu0 %v249
    %281 = vmatprep.subr.mxu0 0.0
    %282 = vmatpush1.msra.mxu0 %v250
    %283 = vmatprep.subr.mxu0 0.0
    %284 = vmatpush1.msra.mxu0 %v251
    %285 = vmatprep.subr.mxu0 0.0
    %286 = vmatpush1.msra.mxu0 %v252
    %287 = vmatprep.subr.mxu0 0.0
    %288 = vmatpush1.msra.mxu0 %v253
    %289 = vmatprep.subr.mxu0 0.0
    %290 = vmatpush1.msra.mxu0 %v254
    %291 = vmatprep.subr.mxu0 0.0
    %292 = vmatpush1.msra.mxu0 %v255
    %293 = vmatprep.subr.mxu0 0.0
    %294 = vmatpush1.msra.mxu0 %v256
    %295 = vmatprep.subr.mxu0 0.0
    %296 = vmatpush1.msra.mxu0 %v257
    %297 = vmatprep.subr.mxu0 0.0
    %298 = vmatpush1.msra.mxu0 0.0
    %299 = vmatprep.subr.mxu0 0.0
    %300 = vmatpush1.msra.mxu0 0.0
    %301 = vmatprep.subr.mxu0 0.0
    %302 = vmatpush1.msra.mxu0 0.0
    %303 = vmatprep.subr.mxu0 0.0
    %304 = vmatpush1.msra.mxu0 0.0
    %305 = vmatprep.subr.mxu0 0.0
    %306 = vmatpush1.msra.mxu0 0.0
    %307 = vmatprep.subr.mxu0 0.0
    %308 = vmatpush1.msra.mxu0 0.0
    %309 = vmatprep.subr.mxu0 0.0
    %310 = vmatpush1.msra.mxu0 0.0
    %311 = vmatprep.subr.mxu0 0.0
    %312 = vmatpush1.msra.mxu0 0.0
    %313 = vmatprep.subr.mxu0 0.0
    %314 = vmatpush1.msra.mxu0 0.0
    %315 = vmatprep.subr.mxu0 0.0
    %316 = vmatpush1.msra.mxu0 0.0
    %317 = vmatprep.subr.mxu0 0.0
    %318 = vmatpush1.msra.mxu0 0.0
    %319 = vmatprep.subr.mxu0 0.0
    %320 = vmatpush1.msra.mxu0 0.0
    %321 = vmatprep.subr.mxu0 0.0
    %322 = vmatpush1.msra.mxu0 0.0
    %323 = vmatprep.subr.mxu0 0.0
    %324 = vmatpush1.msra.mxu0 0.0
    %325 = vmatprep.subr.mxu0 0.0
    %326 = vmatpush1.msra.mxu0 0.0
    %327 = vmatprep.subr.mxu0 0.0
    %328 = vmatpush1.msra.mxu0 0.0
    %329 = vmatprep.mubr.f32.mxu0 0.0
    %330 = vmatmul.mubr.f32.gmra.mrb[0].mxu0 %v241
    %v331 = vpop.f32.mrb[0].mxu0
    %v332 = vadd.f32 %v263, %v331
    %v333 = vpop.f32.mrb[0].mxu0
    %334 = vdwg.mxu0
    %335 = vst [vmem:[#allocation10] sm:$0xff] %v332
    // Predicated region
    $region46: #{tpu_custom_call.1} parent=1 // pred_check
      _
    $region47: #{tpu_custom_call.1} parent=1 // pred_check_branch
      %337 = sbr.rel (0) target = $region49
    $region48: #{tpu_custom_call.1} parent=1 // pred_region
      %s339 = ssub.s32 128, 128
      %340 = vsyncadd [#allocation4], %s339
      %s342 = sshll.u32 [#allocation10], 4
      %s343 = int_to_ptr.vmem [resolvable:$true] %s342
      %345 = dma.vmem_to_hbm [thread:$0]  %s343, 128, %s7, [#allocation4]
    $region49: #{tpu_custom_call.1} parent=1 // pred_fallthru
      _
    // Predicated region
    $region50: #{tpu_custom_call.1} parent=1 // pred_check
      _
    $region51: #{tpu_custom_call.1} parent=1 // pred_check_branch
      %347 = sbr.rel (0) target = $region53
    $region52: #{tpu_custom_call.1} parent=1 // pred_region
      %348 = dma.done [#allocation4], 128
    $region53: #{tpu_custom_call.1} parent=1 // pred_fallthru
      _
    %349 = vsyncpa [#allocation3], 1
    %350 = vsyncpa [#allocation6], 1
    %351 = vsyncpa [#allocation9], 1
    %352 = vsyncpa [#allocation4], 1

</llo_original>
